<compile_context>
chip_gen: v6e
topology: v6e:2x2x1
jax: 0.10.0
libtpu: 0.0.40
codegen_flags: <defaults>
</compile_context>

<pallas_src>
import math

import jax
import jax.numpy as jnp
from jax.experimental import pallas as pl
from jax.experimental.pallas import tpu as pltpu


def _round_up(x, m):
    return ((x + m - 1) // m) * m


def _chip_profile():
    """Generation-aware tiling knobs: VMEM budget, MXU row-fill target, #TCs."""
    kind = ""
    try:
        kind = jax.devices()[0].device_kind.lower()
    except Exception:
        pass
    if "v5e" in kind or "v5 lite" in kind or "v5lite" in kind:
        prof = {"vmem_budget": 96 << 20, "mxu_rows": 128, "num_tc": 1}
    elif "v5" in kind:                       # v5p (megacore)
        prof = {"vmem_budget": 96 << 20, "mxu_rows": 128, "num_tc": 2}
    elif "v6" in kind:
        prof = {"vmem_budget": 96 << 20, "mxu_rows": 256, "num_tc": 1}
    elif "v7" in kind or "7x" in kind:       # v7x: 64 MiB VMEM, 2 TCs
        prof = {"vmem_budget": 40 << 20, "mxu_rows": 256, "num_tc": 2}
    elif "v4" in kind:
        prof = {"vmem_budget": 96 << 20, "mxu_rows": 128, "num_tc": 2}
    else:                                    # unknown: conservative (fits v7x)
        prof = {"vmem_budget": 40 << 20, "mxu_rows": 256, "num_tc": 1}
    try:  # cap by actual physical VMEM if the query is available
        cap = int(pltpu.get_tpu_info().vmem_capacity_bytes)
        prof["vmem_budget"] = min(prof["vmem_budget"], (cap * 3) // 4)
    except Exception:
        pass
    return prof


def _make_kernel(tb, s, e, lane_dense_out):
    def kernel(x_ref, wqkv_ref, bqkv_ref, wo_ref, bo_ref, o_ref):
        cdt = wqkv_ref.dtype  # MXU input dtype (f32 or bf16)

        # x arrives pre-flattened as (1, tb*s, e) and already in `cdt`
        # (cast + flatten done in the wrapper, so the DMA moves bf16 when
        #  compute_dtype=bf16 and there is no in-kernel reshape of x).
        x2d = x_ref[0]

        # Fused QKV projection: one (tb*s, e) @ (e, 3e) MXU matmul against the
        # pre-transposed weight; 1/sqrt(e) is folded into the Q columns.
        qkv = jnp.dot(x2d, wqkv_ref[...],
                      preferred_element_type=jnp.float32) + bqkv_ref[...]

        # Mid-tile lane slices at e<128 are kept as-is (review item 8:
        # padding would triple MXU N-passes; the fused N=3e pass wins).
        q = qkv[:, 0 * e:1 * e].reshape(tb, s, e).astype(cdt)
        k = qkv[:, 1 * e:2 * e].reshape(tb, s, e).astype(cdt)
        v = qkv[:, 2 * e:3 * e].reshape(tb, s, e).astype(cdt)

        # Batched scores, contracting last dims (k.T never materialized).
        scores = jnp.einsum("bqd,bkd->bqk", q, k,
                            preferred_element_type=jnp.float32)   # (tb, s, s)

        # Softmax in f32 with DEFERRED normalization: unnormalized p feeds the
        # context matmul; only the (tb, s, e) context is scaled by the
        # reciprocal (EUP slot), saving a (tb, s, s) VALU multiply.
        m = jnp.max(scores, axis=-1, keepdims=True)
        p = jnp.exp(scores - m)
        denom = jnp.sum(p, axis=-1, keepdims=True)                # (tb, s, 1)

        ctx = jnp.einsum("bqk,bkd->bqd", p.astype(cdt), v,
                         preferred_element_type=jnp.float32)      # (tb, s, e)
        ctx = ctx * pl.reciprocal(denom, approx=True)

        # Output projection against the pre-transposed (e, e) weight.
        out = jnp.dot(ctx.reshape(tb * s, e).astype(cdt), wo_ref[...],
                      preferred_element_type=jnp.float32) + bo_ref[...]

        if lane_dense_out:
            # Lane-dense store: last dim s*e keeps the vst unmasked and the
            # HBM writeback dense (matters most for e < 128).
            o_ref[...] = out.reshape(1, tb, s * e).astype(o_ref.dtype)
        else:
            # Fallback layout (lane-masked stores when e < 128).
            o_ref[...] = out.reshape(1, tb * s, e).astype(o_ref.dtype)

    return kernel


def self_attention(b_obs, params, *, compute_dtype=jnp.float32, block_b=None):
    """b_obs: (B, S, E) float32. params: dict of MHA parameters (PyTorch layout)."""
    B, S, E = b_obs.shape
    out_dtype = b_obs.dtype
    scale = 1.0 / math.sqrt(E)

    # Pre-transpose + fuse QKV weights; fold the 1/sqrt(E) scale into Q.
    w_qkv = jnp.concatenate(
        [params["wq"].T * scale, params["wk"].T, params["wv"].T], axis=1
    ).astype(compute_dtype)                                       # (E, 3E)
    b_qkv = jnp.concatenate(
        [params["bq"] * scale, params["bk"], params["bv"]]
    ).reshape(1, 3 * E).astype(jnp.float32)                       # (1, 3E)
    w_o = params["wo"].T.astype(compute_dtype)                    # (E, E)
    b_o = params["bo"].reshape(1, E).astype(jnp.float32)          # (1, E)

    prof = _chip_profile()
    x_item = jnp.dtype(compute_dtype).itemsize   # x DMAs in compute dtype now
    w_item = jnp.dtype(compute_dtype).itemsize
    o_item = jnp.dtype(out_dtype).itemsize

    mxu_rows = prof["mxu_rows"]
    if x_item < 4 and mxu_rows >= 256:
        mxu_rows *= 2            # bf16 sublane packing: aim for 512 M-rows

    e_pad = _round_up(E, 128)
    e3_pad = _round_up(3 * E, 128)
    s_pad = _round_up(S, 128)

    def _step_vmem_bytes(tb):
        rows = tb * S
        blk_in = 2 * rows * e_pad * x_item                     # x double-buffer
        blk_out = 2 * tb * _round_up(S * E, 128) * o_item      # out double-buffer
        qkv_buf = rows * e3_pad * 4
        scores = 2 * tb * S * s_pad * 4                        # scores + p
        qkv_ctx = 4 * tb * S * e_pad * 4                       # q, k, v, ctx
        weights = 2 * ((E * e3_pad + E * e_pad) * w_item + (e3_pad + e_pad) * 4)
        return blk_in + blk_out + qkv_buf + scores + qkv_ctx + weights

    vmem_budget = prof["vmem_budget"]

    if block_b is None:
        tb = max(1, mxu_rows // S) if S < mxu_rows else 1
        tb = min(tb, B)
    else:
        tb = max(1, min(block_b, B))
    # Clamp tb so the per-step working set fits this generation's VMEM budget
    # (applies to user-supplied block_b too — fixes the earlier unclamped path).
    while tb > 1 and _step_vmem_bytes(tb) > vmem_budget:
        tb //= 2

    # Multi-TensorCore chips only: keep >= num_tc grid steps so the "parallel"
    # batch axis can shard across cores, but never drop below the MXU fill
    # target (on 1-TC chips this halving would only add grid-step overhead).
    if prof["num_tc"] > 1 and B > 1:
        while (pl.cdiv(B, tb) < prof["num_tc"] and tb > 1
               and (tb // 2) * S >= mxu_rows):
            tb //= 2

    n_blocks = pl.cdiv(B, tb)
    Bp = n_blocks * tb

    x = b_obs.astype(compute_dtype)
    if Bp != B:
        x = jnp.pad(x, ((0, Bp - B), (0, 0), (0, 0)))
    # Pre-flatten in the wrapper (free HBM-level reshape): the kernel gets a
    # (tb*S, E) slab per step with no in-kernel reshape/convert of x.
    x = x.reshape(n_blocks, tb * S, E)

    flops = 8 * Bp * S * E * E + 4 * Bp * S * S * E
    bytes_accessed = (Bp * S * E * (x_item + o_item)
                      + 4 * E * E * w_item + 4 * E * 4)
    vmem_limit = int(min(112 << 20,
                         max(32 << 20, _step_vmem_bytes(tb) + (8 << 20))))

    in_specs = [
        pl.BlockSpec((1, tb * S, E), lambda i: (i, 0, 0)),    # x (pre-flattened)
        pl.BlockSpec((E, 3 * E), lambda i: (0, 0)),           # fused W_qkv^T
        pl.BlockSpec((1, 3 * E), lambda i: (0, 0)),           # fused b_qkv
        pl.BlockSpec((E, E), lambda i: (0, 0)),               # W_o^T
        pl.BlockSpec((1, E), lambda i: (0, 0)),               # b_o
    ]
    compiler_params = pltpu.CompilerParams(
        dimension_semantics=("parallel",),
        vmem_limit_bytes=vmem_limit,
    )
    cost = pl.CostEstimate(flops=int(flops),
                           transcendentals=int(Bp * S * S),
                           bytes_accessed=int(bytes_accessed))

    def _run(lane_dense):
        if lane_dense:
            out_shape = jax.ShapeDtypeStruct((n_blocks, tb, S * E), out_dtype)
            out_spec = pl.BlockSpec((1, tb, S * E), lambda i: (i, 0, 0))
        else:
            out_shape = jax.ShapeDtypeStruct((n_blocks, tb * S, E), out_dtype)
            out_spec = pl.BlockSpec((1, tb * S, E), lambda i: (i, 0, 0))
        out = pl.pallas_call(
            _make_kernel(tb, S, E, lane_dense),
            out_shape=out_shape,
            grid_spec=pltpu.PrefetchScalarGridSpec(
                num_scalar_prefetch=0,
                grid=(n_blocks,),
                in_specs=in_specs,
                out_specs=out_spec,
            ),
            compiler_params=compiler_params,
            cost_estimate=cost,
        )(x, w_qkv, b_qkv, w_o, b_o)
        return out.reshape(Bp, S, E)

    try:
        out = _run(lane_dense=True)
    except Exception:
        # The lane-dense store needs the (tb*S, E) -> (tb, S*E) lane relayout
        # to lower in Mosaic; fall back to the lane-masked layout if this
        # toolchain rejects it (correctness identical, only store density).
        out = _run(lane_dense=False)

    return out if Bp == B else out[:B]


def init_params(key, edim):
    """Deterministic init mirroring nn.MultiheadAttention parameter shapes:
    in_proj_weight (3E, E) xavier_uniform-like, in_proj_bias (3E,) zeros,
    out_proj.weight (E, E), out_proj.bias (E,) zeros."""
    k1, k2 = jax.random.split(key)
    limit_in = math.sqrt(6.0 / (edim + edim))
    in_proj_w = jax.random.uniform(k1, (3 * edim, edim), jnp.float32,
                                   -limit_in, limit_in)
    out_w = jax.random.uniform(k2, (edim, edim), jnp.float32,
                               -limit_in, limit_in)
    return {
        "wq": in_proj_w[0 * edim:1 * edim],
        "wk": in_proj_w[1 * edim:2 * edim],
        "wv": in_proj_w[2 * edim:3 * edim],
        "bq": jnp.zeros((edim,), jnp.float32),
        "bk": jnp.zeros((edim,), jnp.float32),
        "bv": jnp.zeros((edim,), jnp.float32),
        "wo": out_w,
        "bo": jnp.zeros((edim,), jnp.float32),
    }


def _reference(b_obs, p):
    """Pure-JAX reference of single-head MHA for sanity checking."""
    q = b_obs @ p["wq"].T + p["bq"]
    k = b_obs @ p["wk"].T + p["bk"]
    v = b_obs @ p["wv"].T + p["bv"]
    scale = 1.0 / math.sqrt(b_obs.shape[-1])
    s = jnp.einsum("bqe,bke->bqk", q, k) * scale
    a = jax.nn.softmax(s, axis=-1)
    ctx = jnp.einsum("bqk,bke->bqe", a, v)
    return ctx @ p["wo"].T + p["bo"]


if __name__ == "__main__":
    B, S, E = 2, 8, 32
    key = jax.random.PRNGKey(0)
    kx, kp = jax.random.split(key)
    b_obs = jax.random.normal(kx, (B, S, E), jnp.float32)
    params = init_params(kp, E)
    ref = _reference(b_obs, params)

    # f32-input path (approx reciprocal in the softmax, deferred normalization).
    out = jax.block_until_ready(self_attention(b_obs, params))
    assert out.shape == (B, S, E)
    assert jnp.allclose(out, ref, atol=1e-2, rtol=1e-2)

    # bf16 MXU-input path (bf16 x DMA, f32 accumulation + f32 softmax).
    out_bf16 = jax.block_until_ready(
        self_attention(b_obs, params, compute_dtype=jnp.bfloat16))
    assert out_bf16.shape == (B, S, E)
    assert jnp.allclose(out_bf16, ref, atol=5e-2, rtol=5e-2)

    # Multi-step grid + batch-padding path (B not a multiple of the block).
    B2 = 5
    b_obs2 = jax.random.normal(kx, (B2, S, E), jnp.float32)
    ref2 = _reference(b_obs2, params)
    out2 = jax.block_until_ready(self_attention(b_obs2, params, block_b=2))
    assert out2.shape == (B2, S, E)
    assert jnp.allclose(out2, ref2, atol=1e-2, rtol=1e-2)

    print("KERNEL_OK")
</pallas_src>

<mosaic_0001>
module attributes {stable_mosaic.version = 11 : i64} {
  func.func @kernel(%arg0: i32, %arg1: memref<1x16x32xf32, #tpu.memory_space<vmem>>, %arg2: memref<32x96xf32, #tpu.memory_space<vmem>>, %arg3: memref<1x96xf32, #tpu.memory_space<vmem>>, %arg4: memref<32x32xf32, #tpu.memory_space<vmem>>, %arg5: memref<1x32xf32, #tpu.memory_space<vmem>>, %arg6: memref<1x2x256xf32, #tpu.memory_space<vmem>>) attributes {dimension_semantics = [#tpu.dimension_semantics<parallel>], iteration_bounds = array<i64: 1>, scalar_prefetch = 0 : i64, scratch_operands = 0 : i64, tpu.core_type = #tpu.core_type<tc>, window_params = [{transform_indices = @transform_0, window_bounds = array<i64: 1, 16, 32>}, {pipeline_mode = #tpu.pipeline_mode<synchronous>, transform_indices = @transform_1, window_bounds = array<i64: 32, 96>}, {pipeline_mode = #tpu.pipeline_mode<synchronous>, transform_indices = @transform_2, window_bounds = array<i64: 1, 96>}, {pipeline_mode = #tpu.pipeline_mode<synchronous>, transform_indices = @transform_3, window_bounds = array<i64: 32, 32>}, {pipeline_mode = #tpu.pipeline_mode<synchronous>, transform_indices = @transform_4, window_bounds = array<i64: 1, 32>}, {transform_indices = @transform_5, window_bounds = array<i64: 1, 2, 256>}]} {
    %c0 = arith.constant 0 : index
    %c0_0 = arith.constant 0 : index
    %c0_1 = arith.constant 0 : index
    %0 = vector.load %arg1[%c0, %c0_0, %c0_1] : memref<1x16x32xf32, #tpu.memory_space<vmem>>, vector<1x16x32xf32>
    %1 = vector.shape_cast %0 : vector<1x16x32xf32> to vector<16x32xf32>
    %c0_2 = arith.constant 0 : index
    %c0_3 = arith.constant 0 : index
    %2 = vector.load %arg2[%c0_2, %c0_3] : memref<32x96xf32, #tpu.memory_space<vmem>>, vector<32x96xf32>
    %cst = arith.constant dense<0.000000e+00> : vector<16x96xf32>
    %3 = tpu.matmul %1, %2, %cst {dimension_numbers = #tpu.dot_dimension_numbers<[1], [0], [0], [1], [0, 0, 1, 1], [], []>} : vector<16x32xf32>, vector<32x96xf32>, vector<16x96xf32> -> vector<16x96xf32>
    %c0_4 = arith.constant 0 : index
    %c0_5 = arith.constant 0 : index
    %4 = vector.load %arg3[%c0_4, %c0_5] : memref<1x96xf32, #tpu.memory_space<vmem>>, vector<1x96xf32>
    %5 = vector.broadcast %4 : vector<1x96xf32> to vector<16x96xf32>
    %6 = arith.addf %3, %5 : vector<16x96xf32>
    %7 = vector.extract_strided_slice %6 {offsets = [0, 0], sizes = [16, 32], strides = [1, 1]} : vector<16x96xf32> to vector<16x32xf32>
    %8 = vector.shape_cast %7 : vector<16x32xf32> to vector<2x8x32xf32>
    %9 = vector.extract_strided_slice %6 {offsets = [0, 32], sizes = [16, 32], strides = [1, 1]} : vector<16x96xf32> to vector<16x32xf32>
    %10 = vector.shape_cast %9 : vector<16x32xf32> to vector<2x8x32xf32>
    %11 = vector.extract_strided_slice %6 {offsets = [0, 64], sizes = [16, 32], strides = [1, 1]} : vector<16x96xf32> to vector<16x32xf32>
    %12 = vector.shape_cast %11 : vector<16x32xf32> to vector<2x8x32xf32>
    "tpu.trace_start"() <{level = 10 : i32, message = "bqd,bkd->bqk"}> : () -> ()
    %cst_6 = arith.constant dense<0.000000e+00> : vector<2x8x8xf32>
    %13 = tpu.matmul %8, %10, %cst_6 {dimension_numbers = #tpu.dot_dimension_numbers<[2], [2], [1], [1], [0, 0, 0, 1, 1, 1], [0], [0]>} : vector<2x8x32xf32>, vector<2x8x32xf32>, vector<2x8x8xf32> -> vector<2x8x8xf32>
    "tpu.trace_stop"() : () -> ()
    %cst_7 = arith.constant dense<0xFF800000> : vector<2x8xf32>
    %14 = vector.multi_reduction <maximumf>, %13, %cst_7 [2] : vector<2x8x8xf32> to vector<2x8xf32>
    %15 = vector.shape_cast %14 : vector<2x8xf32> to vector<2x8x1xf32>
    %16 = vector.broadcast %15 : vector<2x8x1xf32> to vector<2x8x8xf32>
    %17 = arith.subf %13, %16 : vector<2x8x8xf32>
    %18 = math.exp %17 : vector<2x8x8xf32>
    %cst_8 = arith.constant dense<0.000000e+00> : vector<2x8xf32>
    %19 = vector.multi_reduction <add>, %18, %cst_8 [2] : vector<2x8x8xf32> to vector<2x8xf32>
    %20 = vector.shape_cast %19 : vector<2x8xf32> to vector<2x8x1xf32>
    "tpu.trace_start"() <{level = 10 : i32, message = "bqk,bkd->bqd"}> : () -> ()
    %cst_9 = arith.constant dense<0.000000e+00> : vector<2x8x32xf32>
    %21 = tpu.matmul %18, %12, %cst_9 {dimension_numbers = #tpu.dot_dimension_numbers<[2], [1], [1], [2], [0, 0, 0, 1, 1, 2], [0], [0]>} : vector<2x8x8xf32>, vector<2x8x32xf32>, vector<2x8x32xf32> -> vector<2x8x32xf32>
    "tpu.trace_stop"() : () -> ()
    %22 = tpu.reciprocal %20 {approx = true} : vector<2x8x1xf32> -> vector<2x8x1xf32>
    %23 = vector.broadcast %22 : vector<2x8x1xf32> to vector<2x8x32xf32>
    %24 = arith.mulf %21, %23 : vector<2x8x32xf32>
    %25 = vector.shape_cast %24 : vector<2x8x32xf32> to vector<16x32xf32>
    %c0_10 = arith.constant 0 : index
    %c0_11 = arith.constant 0 : index
    %26 = vector.load %arg4[%c0_10, %c0_11] : memref<32x32xf32, #tpu.memory_space<vmem>>, vector<32x32xf32>
    %cst_12 = arith.constant dense<0.000000e+00> : vector<16x32xf32>
    %27 = tpu.matmul %25, %26, %cst_12 {dimension_numbers = #tpu.dot_dimension_numbers<[1], [0], [0], [1], [0, 0, 1, 1], [], []>} : vector<16x32xf32>, vector<32x32xf32>, vector<16x32xf32> -> vector<16x32xf32>
    %c0_13 = arith.constant 0 : index
    %c0_14 = arith.constant 0 : index
    %28 = vector.load %arg5[%c0_13, %c0_14] : memref<1x32xf32, #tpu.memory_space<vmem>>, vector<1x32xf32>
    %29 = vector.broadcast %28 : vector<1x32xf32> to vector<16x32xf32>
    %30 = arith.addf %27, %29 : vector<16x32xf32>
    %31 = vector.shape_cast %30 : vector<16x32xf32> to vector<1x2x256xf32>
    %c0_15 = arith.constant 0 : index
    %c0_16 = arith.constant 0 : index
    %c0_17 = arith.constant 0 : index
    %32 = vector.load %arg6[%c0_15, %c0_16, %c0_17] : memref<1x2x256xf32, #tpu.memory_space<vmem>>, vector<1x2x256xf32>
    tpu.vector_store %arg6[%c0_15, %c0_16, %c0_17], %31 {strides = array<i32>} : memref<1x2x256xf32, #tpu.memory_space<vmem>>, vector<1x2x256xf32>,
    return
  }
  func.func @transform_0(%arg0: i32) -> (i32, i32, i32) {
    %c0_i32 = arith.constant 0 : i32
    %c0_i32_0 = arith.constant 0 : i32
    %c0_i32_1 = arith.constant 0 : i32
    return %arg0, %c0_i32, %c0_i32_0 : i32, i32, i32
  }
  func.func @transform_1(%arg0: i32) -> (i32, i32) {
    %c0_i32 = arith.constant 0 : i32
    %c0_i32_0 = arith.constant 0 : i32
    %c0_i32_1 = arith.constant 0 : i32
    return %c0_i32, %c0_i32_0 : i32, i32
  }
  func.func @transform_2(%arg0: i32) -> (i32, i32) {
    %c0_i32 = arith.constant 0 : i32
    %c0_i32_0 = arith.constant 0 : i32
    %c0_i32_1 = arith.constant 0 : i32
    return %c0_i32, %c0_i32_0 : i32, i32
  }
  func.func @transform_3(%arg0: i32) -> (i32, i32) {
    %c0_i32 = arith.constant 0 : i32
    %c0_i32_0 = arith.constant 0 : i32
    %c0_i32_1 = arith.constant 0 : i32
    return %c0_i32, %c0_i32_0 : i32, i32
  }
  func.func @transform_4(%arg0: i32) -> (i32, i32) {
    %c0_i32 = arith.constant 0 : i32
    %c0_i32_0 = arith.constant 0 : i32
    %c0_i32_1 = arith.constant 0 : i32
    return %c0_i32, %c0_i32_0 : i32, i32
  }
  func.func @transform_5(%arg0: i32) -> (i32, i32, i32) {
    %c0_i32 = arith.constant 0 : i32
    %c0_i32_0 = arith.constant 0 : i32
    %c0_i32_1 = arith.constant 0 : i32
    return %arg0, %c0_i32, %c0_i32_0 : i32, i32, i32
  }
}

module attributes {stable_mosaic.version = 11 : i64} {
  func.func @kernel(%arg0: i32, %arg1: memref<1x16x32xf32, #tpu.memory_space<vmem>>, %arg2: memref<32x96xf32, #tpu.memory_space<vmem>>, %arg3: memref<1x96xf32, #tpu.memory_space<vmem>>, %arg4: memref<32x32xf32, #tpu.memory_space<vmem>>, %arg5: memref<1x32xf32, #tpu.memory_space<vmem>>, %arg6: memref<1x16x32xf32, #tpu.memory_space<vmem>>) attributes {dimension_semantics = [#tpu.dimension_semantics<parallel>], iteration_bounds = array<i64: 1>, scalar_prefetch = 0 : i64, scratch_operands = 0 : i64, tpu.core_type = #tpu.core_type<tc>, window_params = [{transform_indices = @transform_0, window_bounds = array<i64: 1, 16, 32>}, {pipeline_mode = #tpu.pipeline_mode<synchronous>, transform_indices = @transform_1, window_bounds = array<i64: 32, 96>}, {pipeline_mode = #tpu.pipeline_mode<synchronous>, transform_indices = @transform_2, window_bounds = array<i64: 1, 96>}, {pipeline_mode = #tpu.pipeline_mode<synchronous>, transform_indices = @transform_3, window_bounds = array<i64: 32, 32>}, {pipeline_mode = #tpu.pipeline_mode<synchronous>, transform_indices = @transform_4, window_bounds = array<i64: 1, 32>}, {transform_indices = @transform_5, window_bounds = array<i64: 1, 16, 32>}]} {
    %c0 = arith.constant 0 : index
    %c0_0 = arith.constant 0 : index
    %c0_1 = arith.constant 0 : index
    %0 = vector.load %arg1[%c0, %c0_0, %c0_1] : memref<1x16x32xf32, #tpu.memory_space<vmem>>, vector<1x16x32xf32>
    %1 = vector.shape_cast %0 : vector<1x16x32xf32> to vector<16x32xf32>
    %c0_2 = arith.constant 0 : index
    %c0_3 = arith.constant 0 : index
    %2 = vector.load %arg2[%c0_2, %c0_3] : memref<32x96xf32, #tpu.memory_space<vmem>>, vector<32x96xf32>
    %cst = arith.constant dense<0.000000e+00> : vector<16x96xf32>
    %3 = tpu.matmul %1, %2, %cst {dimension_numbers = #tpu.dot_dimension_numbers<[1], [0], [0], [1], [0, 0, 1, 1], [], []>} : vector<16x32xf32>, vector<32x96xf32>, vector<16x96xf32> -> vector<16x96xf32>
    %c0_4 = arith.constant 0 : index
    %c0_5 = arith.constant 0 : index
    %4 = vector.load %arg3[%c0_4, %c0_5] : memref<1x96xf32, #tpu.memory_space<vmem>>, vector<1x96xf32>
    %5 = vector.broadcast %4 : vector<1x96xf32> to vector<16x96xf32>
    %6 = arith.addf %3, %5 : vector<16x96xf32>
    %7 = vector.extract_strided_slice %6 {offsets = [0, 0], sizes = [16, 32], strides = [1, 1]} : vector<16x96xf32> to vector<16x32xf32>
    %8 = vector.shape_cast %7 : vector<16x32xf32> to vector<2x8x32xf32>
    %9 = vector.extract_strided_slice %6 {offsets = [0, 32], sizes = [16, 32], strides = [1, 1]} : vector<16x96xf32> to vector<16x32xf32>
    %10 = vector.shape_cast %9 : vector<16x32xf32> to vector<2x8x32xf32>
    %11 = vector.extract_strided_slice %6 {offsets = [0, 64], sizes = [16, 32], strides = [1, 1]} : vector<16x96xf32> to vector<16x32xf32>
    %12 = vector.shape_cast %11 : vector<16x32xf32> to vector<2x8x32xf32>
    "tpu.trace_start"() <{level = 10 : i32, message = "bqd,bkd->bqk"}> : () -> ()
    %cst_6 = arith.constant dense<0.000000e+00> : vector<2x8x8xf32>
    %13 = tpu.matmul %8, %10, %cst_6 {dimension_numbers = #tpu.dot_dimension_numbers<[2], [2], [1], [1], [0, 0, 0, 1, 1, 1], [0], [0]>} : vector<2x8x32xf32>, vector<2x8x32xf32>, vector<2x8x8xf32> -> vector<2x8x8xf32>
    "tpu.trace_stop"() : () -> ()
    %cst_7 = arith.constant dense<0xFF800000> : vector<2x8xf32>
    %14 = vector.multi_reduction <maximumf>, %13, %cst_7 [2] : vector<2x8x8xf32> to vector<2x8xf32>
    %15 = vector.shape_cast %14 : vector<2x8xf32> to vector<2x8x1xf32>
    %16 = vector.broadcast %15 : vector<2x8x1xf32> to vector<2x8x8xf32>
    %17 = arith.subf %13, %16 : vector<2x8x8xf32>
    %18 = math.exp %17 : vector<2x8x8xf32>
    %cst_8 = arith.constant dense<0.000000e+00> : vector<2x8xf32>
    %19 = vector.multi_reduction <add>, %18, %cst_8 [2] : vector<2x8x8xf32> to vector<2x8xf32>
    %20 = vector.shape_cast %19 : vector<2x8xf32> to vector<2x8x1xf32>
    "tpu.trace_start"() <{level = 10 : i32, message = "bqk,bkd->bqd"}> : () -> ()
    %cst_9 = arith.constant dense<0.000000e+00> : vector<2x8x32xf32>
    %21 = tpu.matmul %18, %12, %cst_9 {dimension_numbers = #tpu.dot_dimension_numbers<[2], [1], [1], [2], [0, 0, 0, 1, 1, 2], [0], [0]>} : vector<2x8x8xf32>, vector<2x8x32xf32>, vector<2x8x32xf32> -> vector<2x8x32xf32>
    "tpu.trace_stop"() : () -> ()
    %22 = tpu.reciprocal %20 {approx = true} : vector<2x8x1xf32> -> vector<2x8x1xf32>
    %23 = vector.broadcast %22 : vector<2x8x1xf32> to vector<2x8x32xf32>
    %24 = arith.mulf %21, %23 : vector<2x8x32xf32>
    %25 = vector.shape_cast %24 : vector<2x8x32xf32> to vector<16x32xf32>
    %c0_10 = arith.constant 0 : index
    %c0_11 = arith.constant 0 : index
    %26 = vector.load %arg4[%c0_10, %c0_11] : memref<32x32xf32, #tpu.memory_space<vmem>>, vector<32x32xf32>
    %cst_12 = arith.constant dense<0.000000e+00> : vector<16x32xf32>
    %27 = tpu.matmul %25, %26, %cst_12 {dimension_numbers = #tpu.dot_dimension_numbers<[1], [0], [0], [1], [0, 0, 1, 1], [], []>} : vector<16x32xf32>, vector<32x32xf32>, vector<16x32xf32> -> vector<16x32xf32>
    %c0_13 = arith.constant 0 : index
    %c0_14 = arith.constant 0 : index
    %28 = vector.load %arg5[%c0_13, %c0_14] : memref<1x32xf32, #tpu.memory_space<vmem>>, vector<1x32xf32>
    %29 = vector.broadcast %28 : vector<1x32xf32> to vector<16x32xf32>
    %30 = arith.addf %27, %29 : vector<16x32xf32>
    %31 = vector.shape_cast %30 : vector<16x32xf32> to vector<1x16x32xf32>
    %c0_15 = arith.constant 0 : index
    %c0_16 = arith.constant 0 : index
    %c0_17 = arith.constant 0 : index
    %32 = vector.load %arg6[%c0_15, %c0_16, %c0_17] : memref<1x16x32xf32, #tpu.memory_space<vmem>>, vector<1x16x32xf32>
    tpu.vector_store %arg6[%c0_15, %c0_16, %c0_17], %31 {strides = array<i32>} : memref<1x16x32xf32, #tpu.memory_space<vmem>>, vector<1x16x32xf32>,
    return
  }
  func.func @transform_0(%arg0: i32) -> (i32, i32, i32) {
    %c0_i32 = arith.constant 0 : i32
    %c0_i32_0 = arith.constant 0 : i32
    %c0_i32_1 = arith.constant 0 : i32
    return %arg0, %c0_i32, %c0_i32_0 : i32, i32, i32
  }
  func.func @transform_1(%arg0: i32) -> (i32, i32) {
    %c0_i32 = arith.constant 0 : i32
    %c0_i32_0 = arith.constant 0 : i32
    %c0_i32_1 = arith.constant 0 : i32
    return %c0_i32, %c0_i32_0 : i32, i32
  }
  func.func @transform_2(%arg0: i32) -> (i32, i32) {
    %c0_i32 = arith.constant 0 : i32
    %c0_i32_0 = arith.constant 0 : i32
    %c0_i32_1 = arith.constant 0 : i32
    return %c0_i32, %c0_i32_0 : i32, i32
  }
  func.func @transform_3(%arg0: i32) -> (i32, i32) {
    %c0_i32 = arith.constant 0 : i32
    %c0_i32_0 = arith.constant 0 : i32
    %c0_i32_1 = arith.constant 0 : i32
    return %c0_i32, %c0_i32_0 : i32, i32
  }
  func.func @transform_4(%arg0: i32) -> (i32, i32) {
    %c0_i32 = arith.constant 0 : i32
    %c0_i32_0 = arith.constant 0 : i32
    %c0_i32_1 = arith.constant 0 : i32
    return %c0_i32, %c0_i32_0 : i32, i32
  }
  func.func @transform_5(%arg0: i32) -> (i32, i32, i32) {
    %c0_i32 = arith.constant 0 : i32
    %c0_i32_0 = arith.constant 0 : i32
    %c0_i32_1 = arith.constant 0 : i32
    return %arg0, %c0_i32, %c0_i32_0 : i32, i32, i32
  }
}

</mosaic_0001>

<llo_original>
// kernel: tpu_custom_call.1
$region0: #{tpu_custom_call.1}
  #allocation0 [shape = 'u32[]', space=smem, size = 0x4, offset = 0x4, fixed_abs, tag = 'smem constant byte address 0x4 - core index']
  #allocation1 [shape = 'u32[144,128]{1,0:T(1,128)}', space=vmem, size = 0x12000, scoped, tag = 'internal scratch']
  %s0 = inlined_call_operand.hbm [shape: f32[1,16,32], index: 0, kind: input, shape index: {}]
  %s1 = inlined_call_operand.hbm [shape: f32[32,96], index: 1, kind: input, shape index: {}]
  %s2 = inlined_call_operand.vmem [shape: f32[1,96], index: 2, kind: input, shape index: {}]
  %s3 = inlined_call_operand.hbm [shape: f32[32,32], index: 3, kind: input, shape index: {}]
  %s4 = inlined_call_operand.vmem [shape: f32[1,32], index: 4, kind: input, shape index: {}]
  %s5 = inlined_call_operand.hbm [shape: f32[1,16,32], index: 5, kind: output, shape index: {}]
  %s6 = sld [smem:[#allocation0]]
  $region42: #{tpu_custom_call.1} parent=0
    _
  %s8 = ssub.s32 1, %s6
  %s9 = scalar_select 0, %s8, %s6
  $region1: #{tpu_custom_call.1} parent=0
    #allocation2 [shape = 'u8[8192]{0}', space=vmem, size = 0x2000, scoped, tag = 'input window, operand 0, single buffered']
    #allocation3 [shape = 's32[1]{0}', space=sflag, size = 0x4, scoped, tag = 'scoped memory for tpu_custom_call.1']
    #allocation4 [shape = 's32[1]{0}', space=sflag, size = 0x4, scoped, tag = 'scoped memory for tpu_custom_call.1']
    #allocation5 [shape = 'u8[16384]{0}', space=vmem, size = 0x4000, scoped, tag = 'input window, operand 1, single buffered']
    #allocation6 [shape = 's32[1]{0}', space=sflag, size = 0x4, scoped, tag = 'scoped memory for tpu_custom_call.1']
    #allocation7 [shape = 'u8[16384]{0}', space=vmem, size = 0x4000, scoped, tag = 'input window, operand 3, single buffered']
    #allocation8 [shape = 'u8[8192]{0}', space=vmem, size = 0x2000, scoped, tag = 'output window, operand 0, single buffered']
    %10 = vsyncpa [#allocation3], 0
    %11 = vsyncpa [#allocation6], 0
    %12 = vsyncpa [#allocation4], 0
    // Predicated region
    $region2: #{tpu_custom_call.1} parent=1 // pred_check
      _
    $region3: #{tpu_custom_call.1} parent=1 // pred_check_branch
      %14 = sbr.rel (0) target = $region5
    $region4: #{tpu_custom_call.1} parent=1 // pred_region
      %s16 = ssub.s32 256, 256
      %17 = vsyncadd [#allocation3], %s16
      %s18 = sshll.u32 [#allocation2], 4
      %s19 = int_to_ptr.vmem [resolvable:$true] %s18
      %24 = dma.hbm_to_vmem [thread:$0]  %s0, 256, %s19, [#allocation3], 128, 128, 8
    $region5: #{tpu_custom_call.1} parent=1 // pred_fallthru
      _
    // Predicated region
    $region6: #{tpu_custom_call.1} parent=1 // pred_check
      _
    $region7: #{tpu_custom_call.1} parent=1 // pred_check_branch
      %26 = sbr.rel (0) target = $region9
    $region8: #{tpu_custom_call.1} parent=1 // pred_region
      %s28 = ssub.s32 512, 512
      %29 = vsyncadd [#allocation6], %s28
      %s30 = sshll.u32 [#allocation5], 4
      %s31 = int_to_ptr.vmem [resolvable:$true] %s30
      %36 = dma.hbm_to_vmem [thread:$0]  %s1, 512, %s31, [#allocation6], 128, 128, 8
    $region9: #{tpu_custom_call.1} parent=1 // pred_fallthru
      _
    // Predicated region
    $region10: #{tpu_custom_call.1} parent=1 // pred_check
      _
    $region11: #{tpu_custom_call.1} parent=1 // pred_check_branch
      %38 = sbr.rel (0) target = $region13
    $region12: #{tpu_custom_call.1} parent=1 // pred_region
      _
    $region13: #{tpu_custom_call.1} parent=1 // pred_fallthru
      _
    // Predicated region
    $region14: #{tpu_custom_call.1} parent=1 // pred_check
      _
    $region15: #{tpu_custom_call.1} parent=1 // pred_check_branch
      %40 = sbr.rel (0) target = $region17
    $region16: #{tpu_custom_call.1} parent=1 // pred_region
      %s42 = ssub.s32 512, 512
      %43 = vsyncadd [#allocation6], %s42
      %s44 = sshll.u32 [#allocation7], 4
      %s45 = int_to_ptr.vmem [resolvable:$true] %s44
      %50 = dma.hbm_to_vmem [thread:$0]  %s3, 512, %s45, [#allocation6], 128, 128, 8
    $region17: #{tpu_custom_call.1} parent=1 // pred_fallthru
      _
    // Predicated region
    $region18: #{tpu_custom_call.1} parent=1 // pred_check
      _
    $region19: #{tpu_custom_call.1} parent=1 // pred_check_branch
      %52 = sbr.rel (0) target = $region21
    $region20: #{tpu_custom_call.1} parent=1 // pred_region
      _
    $region21: #{tpu_custom_call.1} parent=1 // pred_fallthru
      _
    // Predicated region
    $region22: #{tpu_custom_call.1} parent=1 // pred_check
      _
    $region23: #{tpu_custom_call.1} parent=1 // pred_check_branch
      %54 = sbr.rel (0) target = $region25
    $region24: #{tpu_custom_call.1} parent=1 // pred_region
      %55 = dma.done [#allocation3], 256
    $region25: #{tpu_custom_call.1} parent=1 // pred_fallthru
      _
    // Predicated region
    $region26: #{tpu_custom_call.1} parent=1 // pred_check
      _
    $region27: #{tpu_custom_call.1} parent=1 // pred_check_branch
      %57 = sbr.rel (0) target = $region29
    $region28: #{tpu_custom_call.1} parent=1 // pred_region
      %58 = dma.done [#allocation6], 512
    $region29: #{tpu_custom_call.1} parent=1 // pred_fallthru
      _
    // Predicated region
    $region30: #{tpu_custom_call.1} parent=1 // pred_check
      _
    $region31: #{tpu_custom_call.1} parent=1 // pred_check_branch
      %60 = sbr.rel (0) target = $region33
    $region32: #{tpu_custom_call.1} parent=1 // pred_region
      %61 = dma.done [#allocation6], 512
    $region33: #{tpu_custom_call.1} parent=1 // pred_fallthru
      _
    %v62 = vld [vmem:[#allocation2] sm:$0xff]
    %v63 = vld [vmem:[#allocation2 + $0x8] sm:$0xff]
    %v64 = vld [vmem:[#allocation5] sm:$0xff]
    %v65 = vld [vmem:[#allocation5 + $0x8] sm:$0xff]
    %v66 = vld [vmem:[#allocation5 + $0x10] sm:$0xff]
    %v67 = vld [vmem:[#allocation5 + $0x18] sm:$0xff]
    %v68 = vld [vmem:[%s2] sm:$0x1]
    %v70 = vlaneseq
    %v71 = vshrl.u32 %v70, 7
    %v72 = vsub.s32 0, %v71
    %v73 = vrot.slane %v68, %v72
    %vm75 = vcmask 261120
    %v77 = vsel %vm75, %v62, 0
    %v80 = vsel %vm75, %v63, 0
    %82 = vmatprep.subr.mxu0 0.0
    %83 = vmatpush1.msra.mxu0 0.0
    %84 = vmatprep.subr.mxu0 0.0
    %85 = vmatpush1.msra.mxu0 0.0
    %86 = vmatprep.subr.mxu0 0.0
    %87 = vmatpush1.msra.mxu0 0.0
    %88 = vmatprep.subr.mxu0 0.0
    %89 = vmatpush1.msra.mxu0 0.0
    %90 = vmatprep.subr.mxu0 0.0
    %91 = vmatpush1.msra.mxu0 0.0
    %92 = vmatprep.subr.mxu0 0.0
    %93 = vmatpush1.msra.mxu0 0.0
    %94 = vmatprep.subr.mxu0 0.0
    %95 = vmatpush1.msra.mxu0 0.0
    %96 = vmatprep.subr.mxu0 0.0
    %97 = vmatpush1.msra.mxu0 0.0
    %98 = vmatprep.subr.mxu0 0.0
    %99 = vmatpush1.msra.mxu0 0.0
    %100 = vmatprep.subr.mxu0 0.0
    %101 = vmatpush1.msra.mxu0 0.0
    %102 = vmatprep.subr.mxu0 0.0
    %103 = vmatpush1.msra.mxu0 0.0
    %104 = vmatprep.subr.mxu0 0.0
    %105 = vmatpush1.msra.mxu0 0.0
    %106 = vmatprep.subr.mxu0 0.0
    %107 = vmatpush1.msra.mxu0 %v67
    %108 = vmatprep.subr.mxu0 0.0
    %109 = vmatpush1.msra.mxu0 %v66
    %110 = vmatprep.subr.mxu0 0.0
    %111 = vmatpush1.msra.mxu0 %v65
    %112 = vmatprep.subr.mxu0 0.0
    %113 = vmatpush1.msra.mxu0 %v64
    %114 = vmatprep.subr.mxu0 0.0
    %115 = vmatpush2.msra.mxu0 0.0
    %116 = vmatprep.subr.mxu0 0.0
    %117 = vmatpush2.msra.mxu0 0.0
    %118 = vmatprep.subr.mxu0 0.0
    %119 = vmatpush2.msra.mxu0 0.0
    %120 = vmatprep.subr.mxu0 0.0
    %121 = vmatpush2.msra.mxu0 0.0
    %122 = vmatprep.subr.mxu0 0.0
    %123 = vmatpush2.msra.mxu0 0.0
    %124 = vmatprep.subr.mxu0 0.0
    %125 = vmatpush2.msra.mxu0 0.0
    %126 = vmatprep.subr.mxu0 0.0
    %127 = vmatpush2.msra.mxu0 0.0
    %128 = vmatprep.subr.mxu0 0.0
    %129 = vmatpush2.msra.mxu0 0.0
    %130 = vmatprep.subr.mxu0 0.0
    %131 = vmatpush2.msra.mxu0 0.0
    %132 = vmatprep.subr.mxu0 0.0
    %133 = vmatpush2.msra.mxu0 0.0
    %134 = vmatprep.subr.mxu0 0.0
    %135 = vmatpush2.msra.mxu0 0.0
    %136 = vmatprep.subr.mxu0 0.0
    %137 = vmatpush2.msra.mxu0 0.0
    %138 = vmatprep.subr.mxu0 0.0
    %139 = vmatpush2.msra.mxu0 0.0
    %140 = vmatprep.subr.mxu0 0.0
    %141 = vmatpush2.msra.mxu0 0.0
    %142 = vmatprep.subr.mxu0 0.0
    %143 = vmatpush2.msra.mxu0 0.0
    %144 = vmatprep.subr.mxu0 0.0
    %145 = vmatpush2.msra.mxu0 0.0
    %146 = vmatprep.mubr.f32.mxu0 0.0
    %147 = vmatmul.mubr.f32.gmra.mxu0 %v77
    %v148 = vpop.f32.mrf.mxu0
    %v149 = vadd.f32 %v73, %v148
    %v150 = vpop.f32.mrf.mxu0
    %151 = vmatprep.mubr.f32.mxu0 0.0
    %152 = vmatmul.mubr.f32.gmra.mxu0 %v80
    %v153 = vpop.f32.mrf.mxu0
    %v154 = vadd.f32 %v73, %v153
    %v155 = vpop.f32.mrf.mxu0
    %156 = vdwg.mxu0
    %158 = vrot.lane.b32.xlu0 %v149, 96
    %v159 = vpop.permute.xlu0 %158
    %v160 = vsel %vm75, %v149, 0
    %v162 = vsel %vm75, %v159, 0
    %164 = vmatprep.subr.mxu0 0.0
    %165 = vmatpush1.xpose.msra.mxu0 0.0
    %166 = vmatprep.subr.mxu0 0.0
    %167 = vmatpush1.xpose.msra.mxu0 0.0
    %168 = vmatprep.subr.mxu0 0.0
    %169 = vmatpush1.xpose.msra.mxu0 0.0
    %170 = vmatprep.subr.mxu0 0.0
    %171 = vmatpush1.xpose.msra.mxu0 0.0
    %172 = vmatprep.subr.mxu0 0.0
    %173 = vmatpush1.xpose.msra.mxu0 0.0
    %174 = vmatprep.subr.mxu0 0.0
    %175 = vmatpush1.xpose.msra.mxu0 0.0
    %176 = vmatprep.subr.mxu0 0.0
    %177 = vmatpush1.xpose.msra.mxu0 0.0
    %178 = vmatprep.subr.mxu0 0.0
    %179 = vmatpush1.xpose.msra.mxu0 0.0
    %180 = vmatprep.subr.mxu0 0.0
    %181 = vmatpush1.xpose.msra.mxu0 0.0
    %182 = vmatprep.subr.mxu0 0.0
    %183 = vmatpush1.xpose.msra.mxu0 0.0
    %184 = vmatprep.subr.mxu0 0.0
    %185 = vmatpush1.xpose.msra.mxu0 0.0
    %186 = vmatprep.subr.mxu0 0.0
    %187 = vmatpush1.xpose.msra.mxu0 0.0
    %188 = vmatprep.subr.mxu0 0.0
    %189 = vmatpush1.xpose.msra.mxu0 0.0
    %190 = vmatprep.subr.mxu0 0.0
    %191 = vmatpush1.xpose.msra.mxu0 0.0
    %192 = vmatprep.subr.mxu0 0.0
    %193 = vmatpush1.xpose.msra.mxu0 0.0
    %194 = vmatprep.subr.mxu0 0.0
    %195 = vmatpush1.xpose.msra.mxu0 %v162
    %196 = vmatprep.subr.mxu0 0.0
    %197 = vmatpush2.xpose.msra.mxu0 0.0
    %198 = vmatprep.subr.mxu0 0.0
    %199 = vmatpush2.xpose.msra.mxu0 0.0
    %200 = vmatprep.subr.mxu0 0.0
    %201 = vmatpush2.xpose.msra.mxu0 0.0
    %202 = vmatprep.subr.mxu0 0.0
    %203 = vmatpush2.xpose.msra.mxu0 0.0
    %204 = vmatprep.subr.mxu0 0.0
    %205 = vmatpush2.xpose.msra.mxu0 0.0
    %206 = vmatprep.subr.mxu0 0.0
    %207 = vmatpush2.xpose.msra.mxu0 0.0
    %208 = vmatprep.subr.mxu0 0.0
    %209 = vmatpush2.xpose.msra.mxu0 0.0
    %210 = vmatprep.subr.mxu0 0.0
    %211 = vmatpush2.xpose.msra.mxu0 0.0
    %212 = vmatprep.subr.mxu0 0.0
    %213 = vmatpush2.xpose.msra.mxu0 0.0
    %214 = vmatprep.subr.mxu0 0.0
    %215 = vmatpush2.xpose.msra.mxu0 0.0
    %216 = vmatprep.subr.mxu0 0.0
    %217 = vmatpush2.xpose.msra.mxu0 0.0
    %218 = vmatprep.subr.mxu0 0.0
    %219 = vmatpush2.xpose.msra.mxu0 0.0
    %220 = vmatprep.subr.mxu0 0.0
    %221 = vmatpush2.xpose.msra.mxu0 0.0
    %222 = vmatprep.subr.mxu0 0.0
    %223 = vmatpush2.xpose.msra.mxu0 0.0
    %224 = vmatprep.subr.mxu0 0.0
    %225 = vmatpush2.xpose.msra.mxu0 0.0
    %226 = vmatprep.subr.mxu0 0.0
    %227 = vmatpush2.xpose.msra.mxu0 0.0
    %228 = vmatprep.mubr.f32.mxu0 0.0
    %229 = vmatmul.mubr.f32.gmra.mxu0 %v160
    %v230 = vpop.f32.mrf.mxu0
    %v231 = vadd.f32 0.0, %v230
    %v232 = vpop.f32.mrf.mxu0
    %233 = vdwg.mxu0
    %235 = vrot.lane.b32.xlu0 %v154, 96
    %v236 = vpop.permute.xlu0 %235
    %v237 = vsel %vm75, %v154, 0
    %v239 = vsel %vm75, %v236, 0
    %241 = vmatprep.subr.mxu0 0.0
    %242 = vmatpush1.xpose.msra.mxu0 0.0
    %243 = vmatprep.subr.mxu0 0.0
    %244 = vmatpush1.xpose.msra.mxu0 0.0
    %245 = vmatprep.subr.mxu0 0.0
    %246 = vmatpush1.xpose.msra.mxu0 0.0
    %247 = vmatprep.subr.mxu0 0.0
    %248 = vmatpush1.xpose.msra.mxu0 0.0
    %249 = vmatprep.subr.mxu0 0.0
    %250 = vmatpush1.xpose.msra.mxu0 0.0
    %251 = vmatprep.subr.mxu0 0.0
    %252 = vmatpush1.xpose.msra.mxu0 0.0
    %253 = vmatprep.subr.mxu0 0.0
    %254 = vmatpush1.xpose.msra.mxu0 0.0
    %255 = vmatprep.subr.mxu0 0.0
    %256 = vmatpush1.xpose.msra.mxu0 0.0
    %257 = vmatprep.subr.mxu0 0.0
    %258 = vmatpush1.xpose.msra.mxu0 0.0
    %259 = vmatprep.subr.mxu0 0.0
    %260 = vmatpush1.xpose.msra.mxu0 0.0
    %261 = vmatprep.subr.mxu0 0.0
    %262 = vmatpush1.xpose.msra.mxu0 0.0
    %263 = vmatprep.subr.mxu0 0.0
    %264 = vmatpush1.xpose.msra.mxu0 0.0
    %265 = vmatprep.subr.mxu0 0.0
    %266 = vmatpush1.xpose.msra.mxu0 0.0
    %267 = vmatprep.subr.mxu0 0.0
    %268 = vmatpush1.xpose.msra.mxu0 0.0
    %269 = vmatprep.subr.mxu0 0.0
    %270 = vmatpush1.xpose.msra.mxu0 0.0
    %271 = vmatprep.subr.mxu0 0.0
    %272 = vmatpush1.xpose.msra.mxu0 %v239
    %273 = vmatprep.subr.mxu0 0.0
    %274 = vmatpush2.xpose.msra.mxu0 0.0
    %275 = vmatprep.subr.mxu0 0.0
    %276 = vmatpush2.xpose.msra.mxu0 0.0
    %277 = vmatprep.subr.mxu0 0.0
    %278 = vmatpush2.xpose.msra.mxu0 0.0
    %279 = vmatprep.subr.mxu0 0.0
    %280 = vmatpush2.xpose.msra.mxu0 0.0
    %281 = vmatprep.subr.mxu0 0.0
    %282 = vmatpush2.xpose.msra.mxu0 0.0
    %283 = vmatprep.subr.mxu0 0.0
    %284 = vmatpush2.xpose.msra.mxu0 0.0
    %285 = vmatprep.subr.mxu0 0.0
    %286 = vmatpush2.xpose.msra.mxu0 0.0
    %287 = vmatprep.subr.mxu0 0.0
    %288 = vmatpush2.xpose.msra.mxu0 0.0
    %289 = vmatprep.subr.mxu0 0.0
    %290 = vmatpush2.xpose.msra.mxu0 0.0
    %291 = vmatprep.subr.mxu0 0.0
    %292 = vmatpush2.xpose.msra.mxu0 0.0
    %293 = vmatprep.subr.mxu0 0.0
    %294 = vmatpush2.xpose.msra.mxu0 0.0
    %295 = vmatprep.subr.mxu0 0.0
    %296 = vmatpush2.xpose.msra.mxu0 0.0
    %297 = vmatprep.subr.mxu0 0.0
    %298 = vmatpush2.xpose.msra.mxu0 0.0
    %299 = vmatprep.subr.mxu0 0.0
    %300 = vmatpush2.xpose.msra.mxu0 0.0
    %301 = vmatprep.subr.mxu0 0.0
    %302 = vmatpush2.xpose.msra.mxu0 0.0
    %303 = vmatprep.subr.mxu0 0.0
    %304 = vmatpush2.xpose.msra.mxu0 0.0
    %305 = vmatprep.mubr.f32.mxu0 0.0
    %306 = vmatmul.mubr.f32.gmra.mxu0 %v237
    %v307 = vpop.f32.mrf.mxu0
    %v308 = vadd.f32 0.0, %v307
    %v309 = vpop.f32.mrf.mxu0
    %310 = vdwg.mxu0
    %vm311 = vcmask 64512
    %v312 = vsel %vm311, %v231, -inf
    %313 = vmax.xlane.f32.xlu0 %v312
    %v314 = vpop.xlane.xlu0 %313
    %v315 = vsel %vm311, %v308, -inf
    %316 = vmax.xlane.f32.xlu0 %v315
    %v317 = vpop.xlane.xlu0 %316
    %v318 = vsub.f32 %v231, %v314
    %v319 = vsub.f32 %v308, %v317
    %v320 = vmul.f32 %v318, 1.442695
    %v321 = vpow.pop %v320
    %v322 = vmul.f32 %v319, 1.442695
    %v323 = vpow.pop %v322
    %v324 = vsel %vm311, %v321, 0.0
    %325 = vadd.xlane.f32.xlu0 %v324
    %v326 = vpop.xlane.xlu0 %325
    %v327 = vsel %vm311, %v323, 0.0
    %328 = vadd.xlane.f32.xlu0 %v327
    %v329 = vpop.xlane.xlu0 %328
    %330 = vrot.lane.b32.xlu0 %v149, 64
    %v331 = vpop.permute.xlu0 %330
    %v334 = vsel %vm311, %v321, 0
    %336 = vmatprep.subr.mxu0 0.0
    %337 = vmatpush1.msra.mxu0 0.0
    %338 = vmatprep.subr.mxu0 0.0
    %339 = vmatpush1.msra.mxu0 0.0
    %340 = vmatprep.subr.mxu0 0.0
    %341 = vmatpush1.msra.mxu0 0.0
    %342 = vmatprep.subr.mxu0 0.0
    %343 = vmatpush1.msra.mxu0 0.0
    %344 = vmatprep.subr.mxu0 0.0
    %345 = vmatpush1.msra.mxu0 0.0
    %346 = vmatprep.subr.mxu0 0.0
    %347 = vmatpush1.msra.mxu0 0.0
    %348 = vmatprep.subr.mxu0 0.0
    %349 = vmatpush1.msra.mxu0 0.0
    %350 = vmatprep.subr.mxu0 0.0
    %351 = vmatpush1.msra.mxu0 0.0
    %352 = vmatprep.subr.mxu0 0.0
    %353 = vmatpush1.msra.mxu0 0.0
    %354 = vmatprep.subr.mxu0 0.0
    %355 = vmatpush1.msra.mxu0 0.0
    %356 = vmatprep.subr.mxu0 0.0
    %357 = vmatpush1.msra.mxu0 0.0
    %358 = vmatprep.subr.mxu0 0.0
    %359 = vmatpush1.msra.mxu0 0.0
    %360 = vmatprep.subr.mxu0 0.0
    %361 = vmatpush1.msra.mxu0 0.0
    %362 = vmatprep.subr.mxu0 0.0
    %363 = vmatpush1.msra.mxu0 0.0
    %364 = vmatprep.subr.mxu0 0.0
    %365 = vmatpush1.msra.mxu0 0.0
    %366 = vmatprep.subr.mxu0 0.0
    %367 = vmatpush1.msra.mxu0 %v331
    %368 = vmatprep.subr.mxu0 0.0
    %369 = vmatpush2.msra.mxu0 0.0
    %370 = vmatprep.subr.mxu0 0.0
    %371 = vmatpush2.msra.mxu0 0.0
    %372 = vmatprep.subr.mxu0 0.0
    %373 = vmatpush2.msra.mxu0 0.0
    %374 = vmatprep.subr.mxu0 0.0
    %375 = vmatpush2.msra.mxu0 0.0
    %376 = vmatprep.subr.mxu0 0.0
    %377 = vmatpush2.msra.mxu0 0.0
    %378 = vmatprep.subr.mxu0 0.0
    %379 = vmatpush2.msra.mxu0 0.0
    %380 = vmatprep.subr.mxu0 0.0
    %381 = vmatpush2.msra.mxu0 0.0
    %382 = vmatprep.subr.mxu0 0.0
    %383 = vmatpush2.msra.mxu0 0.0
    %384 = vmatprep.subr.mxu0 0.0
    %385 = vmatpush2.msra.mxu0 0.0
    %386 = vmatprep.subr.mxu0 0.0
    %387 = vmatpush2.msra.mxu0 0.0
    %388 = vmatprep.subr.mxu0 0.0
    %389 = vmatpush2.msra.mxu0 0.0
    %390 = vmatprep.subr.mxu0 0.0
    %391 = vmatpush2.msra.mxu0 0.0
    %392 = vmatprep.subr.mxu0 0.0
    %393 = vmatpush2.msra.mxu0 0.0
    %394 = vmatprep.subr.mxu0 0.0
    %395 = vmatpush2.msra.mxu0 0.0
    %396 = vmatprep.subr.mxu0 0.0
    %397 = vmatpush2.msra.mxu0 0.0
    %398 = vmatprep.subr.mxu0 0.0
    %399 = vmatpush2.msra.mxu0 0.0
    %400 = vmatprep.mubr.f32.mxu0 0.0
    %401 = vmatmul.mubr.f32.gmra.mxu0 %v334
    %v402 = vpop.f32.mrf.mxu0
    %v403 = vadd.f32 0.0, %v402
    %v404 = vpop.f32.mrf.mxu0
    %405 = vdwg.mxu0
    %406 = vrot.lane.b32.xlu0 %v154, 64
    %v407 = vpop.permute.xlu0 %406
    %v410 = vsel %vm311, %v323, 0
    %412 = vmatprep.subr.mxu0 0.0
    %413 = vmatpush1.msra.mxu0 0.0
    %414 = vmatprep.subr.mxu0 0.0
    %415 = vmatpush1.msra.mxu0 0.0
    %416 = vmatprep.subr.mxu0 0.0
    %417 = vmatpush1.msra.mxu0 0.0
    %418 = vmatprep.subr.mxu0 0.0
    %419 = vmatpush1.msra.mxu0 0.0
    %420 = vmatprep.subr.mxu0 0.0
    %421 = vmatpush1.msra.mxu0 0.0
    %422 = vmatprep.subr.mxu0 0.0
    %423 = vmatpush1.msra.mxu0 0.0
    %424 = vmatprep.subr.mxu0 0.0
    %425 = vmatpush1.msra.mxu0 0.0
    %426 = vmatprep.subr.mxu0 0.0
    %427 = vmatpush1.msra.mxu0 0.0
    %428 = vmatprep.subr.mxu0 0.0
    %429 = vmatpush1.msra.mxu0 0.0
    %430 = vmatprep.subr.mxu0 0.0
    %431 = vmatpush1.msra.mxu0 0.0
    %432 = vmatprep.subr.mxu0 0.0
    %433 = vmatpush1.msra.mxu0 0.0
    %434 = vmatprep.subr.mxu0 0.0
    %435 = vmatpush1.msra.mxu0 0.0
    %436 = vmatprep.subr.mxu0 0.0
    %437 = vmatpush1.msra.mxu0 0.0
    %438 = vmatprep.subr.mxu0 0.0
    %439 = vmatpush1.msra.mxu0 0.0
    %440 = vmatprep.subr.mxu0 0.0
    %441 = vmatpush1.msra.mxu0 0.0
    %442 = vmatprep.subr.mxu0 0.0
    %443 = vmatpush1.msra.mxu0 %v407
    %444 = vmatprep.subr.mxu0 0.0
    %445 = vmatpush2.msra.mxu0 0.0
    %446 = vmatprep.subr.mxu0 0.0
    %447 = vmatpush2.msra.mxu0 0.0
    %448 = vmatprep.subr.mxu0 0.0
    %449 = vmatpush2.msra.mxu0 0.0
    %450 = vmatprep.subr.mxu0 0.0
    %451 = vmatpush2.msra.mxu0 0.0
    %452 = vmatprep.subr.mxu0 0.0
    %453 = vmatpush2.msra.mxu0 0.0
    %454 = vmatprep.subr.mxu0 0.0
    %455 = vmatpush2.msra.mxu0 0.0
    %456 = vmatprep.subr.mxu0 0.0
    %457 = vmatpush2.msra.mxu0 0.0
    %458 = vmatprep.subr.mxu0 0.0
    %459 = vmatpush2.msra.mxu0 0.0
    %460 = vmatprep.subr.mxu0 0.0
    %461 = vmatpush2.msra.mxu0 0.0
    %462 = vmatprep.subr.mxu0 0.0
    %463 = vmatpush2.msra.mxu0 0.0
    %464 = vmatprep.subr.mxu0 0.0
    %465 = vmatpush2.msra.mxu0 0.0
    %466 = vmatprep.subr.mxu0 0.0
    %467 = vmatpush2.msra.mxu0 0.0
    %468 = vmatprep.subr.mxu0 0.0
    %469 = vmatpush2.msra.mxu0 0.0
    %470 = vmatprep.subr.mxu0 0.0
    %471 = vmatpush2.msra.mxu0 0.0
    %472 = vmatprep.subr.mxu0 0.0
    %473 = vmatpush2.msra.mxu0 0.0
    %474 = vmatprep.subr.mxu0 0.0
    %475 = vmatpush2.msra.mxu0 0.0
    %476 = vmatprep.mubr.f32.mxu0 0.0
    %477 = vmatmul.mubr.f32.gmra.mxu0 %v410
    %v478 = vpop.f32.mrf.mxu0
    %v479 = vadd.f32 0.0, %v478
    %v480 = vpop.f32.mrf.mxu0
    %481 = vdwg.mxu0
    %v482 = vrcp.pop %v326
    %v483 = vrcp.pop %v329
    %v484 = vmul.f32 %v403, %v482
    %v485 = vmul.f32 %v479, %v483
    %v486 = vld [vmem:[#allocation7] sm:$0xff]
    %v487 = vld [vmem:[#allocation7 + $0x8] sm:$0xff]
    %v488 = vld [vmem:[#allocation7 + $0x10] sm:$0xff]
    %v489 = vld [vmem:[#allocation7 + $0x18] sm:$0xff]
    %v490 = vld [vmem:[%s4] sm:$0x1]
    %v492 = vlaneseq
    %v493 = vshrl.u32 %v492, 7
    %v494 = vsub.s32 0, %v493
    %v495 = vrot.slane %v490, %v494
    %v498 = vsel %vm75, %v484, 0
    %v501 = vsel %vm75, %v485, 0
    %503 = vmatprep.subr.mxu0 0.0
    %504 = vmatpush1.msra.mxu0 0.0
    %505 = vmatprep.subr.mxu0 0.0
    %506 = vmatpush1.msra.mxu0 0.0
    %507 = vmatprep.subr.mxu0 0.0
    %508 = vmatpush1.msra.mxu0 0.0
    %509 = vmatprep.subr.mxu0 0.0
    %510 = vmatpush1.msra.mxu0 0.0
    %511 = vmatprep.subr.mxu0 0.0
    %512 = vmatpush1.msra.mxu0 0.0
    %513 = vmatprep.subr.mxu0 0.0
    %514 = vmatpush1.msra.mxu0 0.0
    %515 = vmatprep.subr.mxu0 0.0
    %516 = vmatpush1.msra.mxu0 0.0
    %517 = vmatprep.subr.mxu0 0.0
    %518 = vmatpush1.msra.mxu0 0.0
    %519 = vmatprep.subr.mxu0 0.0
    %520 = vmatpush1.msra.mxu0 0.0
    %521 = vmatprep.subr.mxu0 0.0
    %522 = vmatpush1.msra.mxu0 0.0
    %523 = vmatprep.subr.mxu0 0.0
    %524 = vmatpush1.msra.mxu0 0.0
    %525 = vmatprep.subr.mxu0 0.0
    %526 = vmatpush1.msra.mxu0 0.0
    %527 = vmatprep.subr.mxu0 0.0
    %528 = vmatpush1.msra.mxu0 %v489
    %529 = vmatprep.subr.mxu0 0.0
    %530 = vmatpush1.msra.mxu0 %v488
    %531 = vmatprep.subr.mxu0 0.0
    %532 = vmatpush1.msra.mxu0 %v487
    %533 = vmatprep.subr.mxu0 0.0
    %534 = vmatpush1.msra.mxu0 %v486
    %535 = vmatprep.subr.mxu0 0.0
    %536 = vmatpush2.msra.mxu0 0.0
    %537 = vmatprep.subr.mxu0 0.0
    %538 = vmatpush2.msra.mxu0 0.0
    %539 = vmatprep.subr.mxu0 0.0
    %540 = vmatpush2.msra.mxu0 0.0
    %541 = vmatprep.subr.mxu0 0.0
    %542 = vmatpush2.msra.mxu0 0.0
    %543 = vmatprep.subr.mxu0 0.0
    %544 = vmatpush2.msra.mxu0 0.0
    %545 = vmatprep.subr.mxu0 0.0
    %546 = vmatpush2.msra.mxu0 0.0
    %547 = vmatprep.subr.mxu0 0.0
    %548 = vmatpush2.msra.mxu0 0.0
    %549 = vmatprep.subr.mxu0 0.0
    %550 = vmatpush2.msra.mxu0 0.0
    %551 = vmatprep.subr.mxu0 0.0
    %552 = vmatpush2.msra.mxu0 0.0
    %553 = vmatprep.subr.mxu0 0.0
    %554 = vmatpush2.msra.mxu0 0.0
    %555 = vmatprep.subr.mxu0 0.0
    %556 = vmatpush2.msra.mxu0 0.0
    %557 = vmatprep.subr.mxu0 0.0
    %558 = vmatpush2.msra.mxu0 0.0
    %559 = vmatprep.subr.mxu0 0.0
    %560 = vmatpush2.msra.mxu0 0.0
    %561 = vmatprep.subr.mxu0 0.0
    %562 = vmatpush2.msra.mxu0 0.0
    %563 = vmatprep.subr.mxu0 0.0
    %564 = vmatpush2.msra.mxu0 0.0
    %565 = vmatprep.subr.mxu0 0.0
    %566 = vmatpush2.msra.mxu0 0.0
    %567 = vmatprep.mubr.f32.mxu0 0.0
    %568 = vmatmul.mubr.f32.gmra.mxu0 %v498
    %v569 = vpop.f32.mrf.mxu0
    %v570 = vadd.f32 %v495, %v569
    %v571 = vpop.f32.mrf.mxu0
    %572 = vmatprep.mubr.f32.mxu0 0.0
    %573 = vmatmul.mubr.f32.gmra.mxu0 %v501
    %v574 = vpop.f32.mrf.mxu0
    %v575 = vadd.f32 %v495, %v574
    %v576 = vpop.f32.mrf.mxu0
    %577 = vdwg.mxu0
    %578 = vst.msk [vmem:[#allocation8] sm:$0xff] %vm75, %v570
    %579 = vst.msk [vmem:[#allocation8 + $0x8] sm:$0xff] %vm75, %v575
    // Predicated region
    $region34: #{tpu_custom_call.1} parent=1 // pred_check
      _
    $region35: #{tpu_custom_call.1} parent=1 // pred_check_branch
      %581 = sbr.rel (0) target = $region37
    $region36: #{tpu_custom_call.1} parent=1 // pred_region
      %s583 = ssub.s32 256, 256
      %584 = vsyncadd [#allocation4], %s583
      %s585 = sshll.u32 [#allocation8], 4
      %s586 = int_to_ptr.vmem [resolvable:$true] %s585
      %591 = dma.vmem_to_hbm [thread:$0]  %s586, 256, %s5, [#allocation4], 128, 128, 8
    $region37: #{tpu_custom_call.1} parent=1 // pred_fallthru
      _
    // Predicated region
    $region38: #{tpu_custom_call.1} parent=1 // pred_check
      _
    $region39: #{tpu_custom_call.1} parent=1 // pred_check_branch
      %593 = sbr.rel (0) target = $region41
    $region40: #{tpu_custom_call.1} parent=1 // pred_region
      %594 = dma.done [#allocation4], 256
    $region41: #{tpu_custom_call.1} parent=1 // pred_fallthru
      _
    %595 = vsyncpa [#allocation3], 1
    %596 = vsyncpa [#allocation6], 1
    %597 = vsyncpa [#allocation4], 1

</llo_original>
